<compile_context>
chip_gen: v7x
topology: tpu7x:2x2x1
jax: 0.10.0
libtpu: 0.0.40
codegen_flags: <defaults>
</compile_context>

<pallas_src>
import functools

import numpy as np
import jax
import jax.numpy as jnp
from jax import lax
from jax.experimental import pallas as pl
from jax.experimental.pallas import tpu as pltpu


# ----------------------------------------------------------------------------
# Small helpers (VMEM-padding-aware block sizing)
# ----------------------------------------------------------------------------
def _round_up(v, m):
    return ((v + m - 1) // m) * m


def _pb(sublane, lane, itemsize):
    """Padded VMEM bytes of a 2-D tile with the given trailing dims."""
    return _round_up(max(int(sublane), 1), 8) * _round_up(max(int(lane), 1), 128) * itemsize


def _choose_cg(num_groups, bytes_per_group, budget):
    """Largest divisor of num_groups whose per-step footprint fits the budget."""
    cg = 1
    for d in range(1, num_groups + 1):
        if num_groups % d == 0 and d * bytes_per_group <= budget:
            cg = d
    return cg


def _vmem_ceiling():
    """v7x-safe scoped-VMEM ceiling (never request more than ~48 MiB)."""
    cap = None
    try:
        info = pltpu.get_tpu_info()
        cap = int(getattr(info, "vmem_capacity_bytes", 0)) or None
    except Exception:
        cap = None
    if cap is None:
        cap = 64 << 20  # assume the smallest (v7x) if the query fails
    return int(min(max(cap // 2, 16 << 20), 48 << 20))


# ----------------------------------------------------------------------------
# Pallas kernels
# ----------------------------------------------------------------------------
def _skip_kernel_spatial(x_ref, ph_ref, pwt_ref, o_ref, *,
                         cg, cin_blk, cout_blk, H, W, Ho, Wo):
    # x_ref:   (1, cg*cin_blk, H, W)   one batch, cg channel-groups
    # ph_ref:  (Ho, H)                 height pool/repeat matrix (f32)
    # pwt_ref: (W, Wo)                 width pool/repeat matrix, transposed
    # o_ref:   (1, cg*cout_blk, Ho, Wo)
    x = x_ref[0]                                            # (cg*cin_blk, H, W)
    if cin_blk > 1:
        # channel mean on the VPU (reduce over a leading, untiled dim)
        xm = jnp.mean(x.reshape(cg, cin_blk, H, W).astype(jnp.float32), axis=1)
    else:
        xm = x                                              # (cg, H, W), input dtype

    # W transform (lane-axis contraction) as ONE flattened MXU matmul.
    t = jnp.dot(xm.reshape(cg * H, W), pwt_ref[...],
                preferred_element_type=jnp.float32)          # (cg*H, Wo) f32
    t = t.reshape(cg, H, Wo)

    # H transform as ONE canonical batched matmul: (cg,Ho,H) x (cg,H,Wo).
    ph_b = jnp.broadcast_to(ph_ref[...][None], (cg, Ho, H))
    y = lax.dot_general(ph_b, t,
                        dimension_numbers=(((2,), (1,)), ((0,), (0,))),
                        preferred_element_type=jnp.float32)  # (cg, Ho, Wo)
    y = y.astype(o_ref.dtype)

    if cout_blk > 1:
        # channel repeat purely at store time (leading-dim broadcast + merge)
        y = jnp.broadcast_to(y[:, None], (cg, cout_blk, Ho, Wo))
        y = y.reshape(cg * cout_blk, Ho, Wo)
    o_ref[0] = y


def _skip_kernel_cmean(x_ref, o_ref, *, inv_n):
    # sf == 1, channel mean.  x_ref: (1, cg, n, HW); o_ref: (1, cg, 1, HW)
    x = x_ref[0].astype(jnp.float32)                         # (cg, n, HW)
    o_ref[0] = (jnp.sum(x, axis=1, keepdims=True) * inv_n).astype(o_ref.dtype)


def _skip_kernel_crepeat(x_ref, o_ref, *, cout_blk):
    # sf == 1, channel repeat.  x_ref: (1, cg, 1, HW); o_ref: (1, cg, n, HW)
    x = x_ref[0]                                             # (cg, 1, HW), no cast
    o_ref[0] = jnp.broadcast_to(x, (x.shape[0], cout_blk, x.shape[2]))


# ----------------------------------------------------------------------------
# Constant-matrix builders for the spatial (H / W) axes (plain numpy)
# ----------------------------------------------------------------------------
def _mean_matrix(n_out, n_in, factor):
    # out[o] = mean(in[o*factor : (o+1)*factor])  (avg_pool2d truncation)
    P = np.zeros((n_out, n_in), np.float32)
    for o in range(n_out):
        P[o, o * factor:(o + 1) * factor] = 1.0 / factor
    return P


def _repeat_matrix(n_out, n_in, factor):
    # out[o] = in[o // factor]   (einops '(h h2)' grouping)
    P = np.zeros((n_out, n_in), np.float32)
    for o in range(n_out):
        P[o, o // factor] = 1.0
    return P


def _spatial_matrices(H, W, spatial_factor):
    if spatial_factor > 1:
        s = int(spatial_factor)
        return _repeat_matrix(H * s, H, s), _repeat_matrix(W * s, W, s)
    s = int(1.0 / spatial_factor)
    if (H % s == 0 and W % s == 0) or (H >= s and W >= s):
        # einops.reduce mean (divisible) or avg_pool2d(kernel=stride=s)
        return _mean_matrix(H // s, H, s), _mean_matrix(W // s, W, s)
    assert W > 1 or H > 1
    # global mean -> 1x1
    return (np.full((1, H), 1.0 / H, np.float32),
            np.full((1, W), 1.0 / W, np.float32))


# ----------------------------------------------------------------------------
# Wrapper
# ----------------------------------------------------------------------------
def skip_connection(x, in_channels, out_channels, spatial_factor=1.0):
    """Pallas implementation of SkipConnection.forward for NCHW input."""
    sf = spatial_factor
    assert sf == 1 or int(sf) > 1 or int(1 / sf) > 1, \
        f'invalid spatial scale factor in SpikeFunction: {sf}'
    B, C, H, W = x.shape
    assert C == in_channels

    # Channel grouping.  Channel op and spatial op act on disjoint axes, so
    # the composition in forward() (either order) equals the fused map below.
    if in_channels == out_channels:
        cin_blk, cout_blk, G = 1, 1, in_channels
    elif in_channels % out_channels == 0 and in_channels > out_channels:
        n = in_channels // out_channels
        cin_blk, cout_blk, G = n, 1, out_channels            # mean over groups of n
    elif out_channels % in_channels == 0 and out_channels > in_channels:
        n = out_channels // in_channels
        cin_blk, cout_blk, G = 1, n, in_channels             # repeat n times
    else:
        # matches the PyTorch module: non-divisible channels raise
        raise ValueError('in_channels % out_channels is not 0')

    spatial = (sf != 1)

    # Identity fast path: nothing to compute, no HBM round trip.
    if not spatial and in_channels == out_channels:
        return x

    itemsize = x.dtype.itemsize
    Co = out_channels
    ceiling = _vmem_ceiling()

    if spatial:
        PH, PW = _spatial_matrices(H, W, sf)                 # (Ho, H), (Wo, W)
        Ho, Wo = PH.shape[0], PW.shape[0]
        # constants: PH always f32 (2nd matmul runs on the f32 intermediate);
        # PW matches the input dtype when there is no channel mean and the
        # matrix is a 0/1 repeat matrix (exact in any float dtype).
        pwt_dtype = x.dtype if (cin_blk == 1 and sf > 1) else jnp.float32
        ph = jnp.asarray(PH, dtype=jnp.float32)
        pwt = jnp.asarray(PW.T, dtype=pwt_dtype)

        in_pg = cin_blk * _pb(H, W, itemsize)
        out_pg = cout_blk * _pb(Ho, Wo, itemsize)
        # f32 intermediates per group inside the kernel (xm, t, ph_b, y, store)
        interm_pg = (_pb(H, W, 4) + _pb(H, Wo, 4) + _pb(Ho, H, 4)
                     + _pb(Ho, Wo, 4) + cout_blk * _pb(Ho, Wo, itemsize))
        cg = _choose_cg(G, 2 * (in_pg + out_pg) + interm_pg, budget=6 << 20)
        const_b = _pb(Ho, H, 4) + _pb(W, Wo, pwt.dtype.itemsize)
        need = 2 * cg * (in_pg + out_pg) + cg * interm_pg + 2 * const_b + (8 << 20)

        kernel = functools.partial(_skip_kernel_spatial, cg=cg,
                                   cin_blk=cin_blk, cout_blk=cout_blk,
                                   H=H, W=W, Ho=Ho, Wo=Wo)
        in_specs = [pl.BlockSpec((1, cg * cin_blk, H, W), lambda b, g: (b, g, 0, 0)),
                    pl.BlockSpec((Ho, H), lambda b, g: (0, 0)),
                    pl.BlockSpec((W, Wo), lambda b, g: (0, 0))]
        out_specs = pl.BlockSpec((1, cg * cout_blk, Ho, Wo), lambda b, g: (b, g, 0, 0))
        out_struct = jax.ShapeDtypeStruct((B, Co, Ho, Wo), x.dtype)
        args = (x, ph, pwt)
        flops = 2 * B * G * (H * W * Wo + Ho * H * Wo) + B * C * H * W
    else:
        # sf == 1: channel-only path, lane-dense grouped layout (free reshape).
        HW = H * W
        Ho, Wo = H, W
        xr = x.reshape(B, G, cin_blk, HW)
        in_pg = _pb(cin_blk, HW, itemsize)
        out_pg = _pb(cout_blk, HW, itemsize)
        cg = _choose_cg(G, 2 * (in_pg + out_pg), budget=4 << 20)
        need = 2 * cg * (in_pg + out_pg) + (8 << 20)

        if cin_blk > 1:
            kernel = functools.partial(_skip_kernel_cmean, inv_n=1.0 / cin_blk)
        else:
            kernel = functools.partial(_skip_kernel_crepeat, cout_blk=cout_blk)
        in_specs = [pl.BlockSpec((1, cg, cin_blk, HW), lambda b, g: (b, g, 0, 0))]
        out_specs = pl.BlockSpec((1, cg, cout_blk, HW), lambda b, g: (b, g, 0, 0))
        out_struct = jax.ShapeDtypeStruct((B, G, cout_blk, HW), x.dtype)
        args = (xr,)
        flops = B * G * cin_blk * HW

    vmem_limit = int(min(max(need, 16 << 20), ceiling))
    bytes_accessed = int(x.size * itemsize
                         + int(np.prod(out_struct.shape)) * itemsize)
    cost = pl.CostEstimate(flops=int(flops), transcendentals=0,
                           bytes_accessed=bytes_accessed)

    out = pl.pallas_call(
        kernel,
        out_shape=out_struct,
        grid_spec=pltpu.PrefetchScalarGridSpec(
            num_scalar_prefetch=0,
            grid=(B, G // cg),
            in_specs=in_specs,
            out_specs=out_specs,
        ),
        compiler_params=pltpu.CompilerParams(
            dimension_semantics=("parallel", "parallel"),
            vmem_limit_bytes=vmem_limit),
        cost_estimate=cost,
    )(*args)

    if not spatial:
        out = out.reshape(B, Co, H, W)
    return out


# ----------------------------------------------------------------------------
# Pure-JAX reference (mirrors the PyTorch forward) for a quick sanity check
# ----------------------------------------------------------------------------
def _reference(x, in_channels, out_channels, spatial_factor):
    def channel_skip(v):
        B, C, H, W = v.shape
        if in_channels == out_channels:
            return v
        if in_channels > out_channels:
            n = in_channels // out_channels
            return v.reshape(B, out_channels, n, H, W).mean(axis=2)
        n = out_channels // in_channels
        return jnp.repeat(v, n, axis=1)

    def scale_skip(v):
        B, C, H, W = v.shape
        if spatial_factor == 1:
            return v
        if spatial_factor > 1:
            s = int(spatial_factor)
            return jnp.repeat(jnp.repeat(v, s, axis=2), s, axis=3)
        s = int(1 / spatial_factor)
        if H >= s and W >= s:
            Ho, Wo = H // s, W // s
            v = v[:, :, :Ho * s, :Wo * s]
            return v.reshape(B, C, Ho, s, Wo, s).mean(axis=(3, 5))
        return v.mean(axis=(2, 3), keepdims=True)

    if spatial_factor > 1:
        return scale_skip(channel_skip(x))
    return channel_skip(scale_skip(x))


if __name__ == "__main__":
    key = jax.random.PRNGKey(0)
    k1, k2 = jax.random.split(key)
    x = jax.random.normal(k1, (2, 4, 16, 16), dtype=jnp.float32)
    x8 = jax.random.normal(k2, (2, 8, 16, 16), dtype=jnp.float32)

    # 1) downsample: channels 4 -> 2 (mean), spatial_factor 0.5 (2x2 mean pool)
    y = skip_connection(x, 4, 2, 0.5)
    jax.block_until_ready(y)
    assert y.shape == (2, 2, 8, 8)
    assert jnp.allclose(y, _reference(x, 4, 2, 0.5), atol=1e-5, rtol=1e-5)

    # 2) upsample: channels 4 -> 8 (repeat), spatial_factor 2 (pixel duplicate)
    y = skip_connection(x, 4, 8, 2.0)
    jax.block_until_ready(y)
    assert y.shape == (2, 8, 32, 32)
    assert jnp.allclose(y, _reference(x, 4, 8, 2.0), atol=1e-5, rtol=1e-5)

    # 3) channel-only mean (sf == 1): lane-dense (B, G, n, HW) path
    y = skip_connection(x, 4, 2, 1.0)
    jax.block_until_ready(y)
    assert y.shape == (2, 2, 16, 16)
    assert jnp.allclose(y, _reference(x, 4, 2, 1.0), atol=1e-5, rtol=1e-5)

    # 4) channel-only repeat (sf == 1)
    y = skip_connection(x, 4, 8, 1.0)
    jax.block_until_ready(y)
    assert y.shape == (2, 8, 16, 16)
    assert jnp.allclose(y, _reference(x, 4, 8, 1.0), atol=1e-5, rtol=1e-5)

    # 5) full identity fast path: no kernel launch at all
    y = skip_connection(x, 4, 4, 1.0)
    assert y is x

    # 6) pure spatial downsample (in == out channels)
    y = skip_connection(x8, 8, 8, 0.5)
    jax.block_until_ready(y)
    assert y.shape == (2, 8, 8, 8)
    assert jnp.allclose(y, _reference(x8, 8, 8, 0.5), atol=1e-5, rtol=1e-5)

    # 7) pure spatial upsample (in == out channels)
    y = skip_connection(x8, 8, 8, 2.0)
    jax.block_until_ready(y)
    assert y.shape == (2, 8, 32, 32)
    assert jnp.allclose(y, _reference(x8, 8, 8, 2.0), atol=1e-5, rtol=1e-5)

    print("KERNEL_OK")
</pallas_src>

<mosaic_0001>
module attributes {stable_mosaic.version = 11 : i64} {
  func.func @_skip_kernel_spatial(%arg0: i32, %arg1: i32, %arg2: memref<1x4x16x16xf32, #tpu.memory_space<vmem>>, %arg3: memref<8x16xf32, #tpu.memory_space<vmem>>, %arg4: memref<16x8xf32, #tpu.memory_space<vmem>>, %arg5: memref<1x2x8x8xf32, #tpu.memory_space<vmem>>) attributes {dimension_semantics = [#tpu.dimension_semantics<parallel>, #tpu.dimension_semantics<parallel>], iteration_bounds = array<i64: 2, 1>, scalar_prefetch = 0 : i64, scratch_operands = 0 : i64, tpu.core_type = #tpu.core_type<tc>, window_params = [{transform_indices = @transform_0, window_bounds = array<i64: 1, 4, 16, 16>}, {pipeline_mode = #tpu.pipeline_mode<synchronous>, transform_indices = @transform_1, window_bounds = array<i64: 8, 16>}, {pipeline_mode = #tpu.pipeline_mode<synchronous>, transform_indices = @transform_2, window_bounds = array<i64: 16, 8>}, {transform_indices = @transform_3, window_bounds = array<i64: 1, 2, 8, 8>}]} {
    %c0 = arith.constant 0 : index
    %c0_0 = arith.constant 0 : index
    %c0_1 = arith.constant 0 : index
    %c0_2 = arith.constant 0 : index
    %0 = vector.load %arg2[%c0, %c0_0, %c0_1, %c0_2] : memref<1x4x16x16xf32, #tpu.memory_space<vmem>>, vector<1x4x16x16xf32>
    %1 = vector.shape_cast %0 : vector<1x4x16x16xf32> to vector<4x16x16xf32>
    %2 = vector.shape_cast %1 : vector<4x16x16xf32> to vector<2x2x16x16xf32>
    %cst = arith.constant dense<0.000000e+00> : vector<2x16x16xf32>
    %3 = vector.multi_reduction <add>, %2, %cst [1] : vector<2x2x16x16xf32> to vector<2x16x16xf32>
    %cst_3 = arith.constant 2.000000e+00 : f32
    %4 = vector.broadcast %cst_3 : f32 to vector<2x16x16xf32>
    %5 = arith.divf %3, %4 : vector<2x16x16xf32>
    %6 = vector.shape_cast %5 : vector<2x16x16xf32> to vector<32x16xf32>
    %c0_4 = arith.constant 0 : index
    %c0_5 = arith.constant 0 : index
    %7 = vector.load %arg4[%c0_4, %c0_5] : memref<16x8xf32, #tpu.memory_space<vmem>>, vector<16x8xf32>
    %cst_6 = arith.constant dense<0.000000e+00> : vector<32x8xf32>
    %8 = tpu.matmul %6, %7, %cst_6 {dimension_numbers = #tpu.dot_dimension_numbers<[1], [0], [0], [1], [0, 0, 1, 1], [], []>} : vector<32x16xf32>, vector<16x8xf32>, vector<32x8xf32> -> vector<32x8xf32>
    %9 = vector.shape_cast %8 : vector<32x8xf32> to vector<2x16x8xf32>
    %c0_7 = arith.constant 0 : index
    %c0_8 = arith.constant 0 : index
    %10 = vector.load %arg3[%c0_7, %c0_8] : memref<8x16xf32, #tpu.memory_space<vmem>>, vector<8x16xf32>
    %11 = vector.shape_cast %10 : vector<8x16xf32> to vector<1x8x16xf32>
    %12 = vector.shape_cast %11 : vector<1x8x16xf32> to vector<1x8x16xf32>
    %13 = vector.broadcast %12 : vector<1x8x16xf32> to vector<2x8x16xf32>
    %cst_9 = arith.constant dense<0.000000e+00> : vector<2x8x8xf32>
    %14 = tpu.matmul %13, %9, %cst_9 {dimension_numbers = #tpu.dot_dimension_numbers<[2], [1], [1], [2], [0, 0, 0, 1, 1, 2], [0], [0]>} : vector<2x8x16xf32>, vector<2x16x8xf32>, vector<2x8x8xf32> -> vector<2x8x8xf32>
    %c0_10 = arith.constant 0 : index
    %c0_11 = arith.constant 0 : index
    %c0_12 = arith.constant 0 : index
    %c0_13 = arith.constant 0 : index
    %15 = vector.load %arg5[%c0_10, %c0_11, %c0_12, %c0_13] : memref<1x2x8x8xf32, #tpu.memory_space<vmem>>, vector<1x2x8x8xf32>
    %16 = vector.shape_cast %15 : vector<1x2x8x8xf32> to vector<2x8x8xf32>
    %17 = vector.shape_cast %14 : vector<2x8x8xf32> to vector<1x2x8x8xf32>
    tpu.vector_store %arg5[%c0_10, %c0_11, %c0_12, %c0_13], %17 {strides = array<i32>} : memref<1x2x8x8xf32, #tpu.memory_space<vmem>>, vector<1x2x8x8xf32>,
    return
  }
  func.func @transform_0(%arg0: i32, %arg1: i32) -> (i32, i32, i32, i32) {
    %c0_i32 = arith.constant 0 : i32
    %c0_i32_0 = arith.constant 0 : i32
    %c0_i32_1 = arith.constant 0 : i32
    return %arg0, %arg1, %c0_i32, %c0_i32_0 : i32, i32, i32, i32
  }
  func.func @transform_1(%arg0: i32, %arg1: i32) -> (i32, i32) {
    %c0_i32 = arith.constant 0 : i32
    %c0_i32_0 = arith.constant 0 : i32
    %c0_i32_1 = arith.constant 0 : i32
    return %c0_i32, %c0_i32_0 : i32, i32
  }
  func.func @transform_2(%arg0: i32, %arg1: i32) -> (i32, i32) {
    %c0_i32 = arith.constant 0 : i32
    %c0_i32_0 = arith.constant 0 : i32
    %c0_i32_1 = arith.constant 0 : i32
    return %c0_i32, %c0_i32_0 : i32, i32
  }
  func.func @transform_3(%arg0: i32, %arg1: i32) -> (i32, i32, i32, i32) {
    %c0_i32 = arith.constant 0 : i32
    %c0_i32_0 = arith.constant 0 : i32
    %c0_i32_1 = arith.constant 0 : i32
    return %arg0, %arg1, %c0_i32, %c0_i32_0 : i32, i32, i32, i32
  }
}

</mosaic_0001>

<llo_original>
// kernel: tpu_custom_call.1
$region0: #{tpu_custom_call.1}
  #allocation0 [shape = 'u32[]', space=smem, size = 0x4, offset = 0x4, fixed_abs, tag = 'smem constant byte address 0x4 - core index']
  #allocation1 [shape = 'u32[144,128]{1,0:T(1,128)}', space=vmem, size = 0x12000, scoped, tag = 'internal scratch']
  %s0 = inlined_call_operand.hbm [shape: f32[2,4,16,16], index: 0, kind: input, shape index: {}]
  %s1 = inlined_call_operand.vmem [shape: f32[8,16], index: 1, kind: input, shape index: {}]
  %s2 = inlined_call_operand.vmem [shape: f32[16,8], index: 2, kind: input, shape index: {}]
  %s3 = inlined_call_operand.hbm [shape: f32[2,2,8,8], index: 3, kind: output, shape index: {}]
  %s4 = sld [smem:[#allocation0]]
  $region49: #{tpu_custom_call.1} parent=0
    _
  %s6 = ssub.s32 1, %s4
  %s7 = scalar_select 0, %s6, %s4
  $region1: #{tpu_custom_call.1} parent=0
    #allocation2 [shape = 'u8[65536]{0}', space=vmem, size = 0x10000, scoped, tag = 'input window, operand 0']
    #allocation3 [shape = 's32[2]{0}', space=sflag, size = 0x8, scoped, tag = 'scoped memory for tpu_custom_call.1']
    #allocation4 [shape = 's32[2]{0}', space=sflag, size = 0x8, scoped, tag = 'scoped memory for tpu_custom_call.1']
    #allocation5 [shape = 'u8[16384]{0}', space=vmem, size = 0x4000, scoped, tag = 'output window, operand 0']
    %8 = vsyncpa [#allocation3], 0
    %s9 = scalar_lea.sflag [#allocation3], 1
    %10 = vsyncpa %s9, 0
    %11 = vsyncpa [#allocation4], 0
    %s12 = scalar_lea.sflag [#allocation4], 1
    %13 = vsyncpa %s12, 0
    loop: start=0, step=1, limit=4
    $region2: #{tpu_custom_call.1} parent=1 // loop_pre_header
      _
    $region3: #{tpu_custom_call.1} parent=1 // loop_header
      %s15 = sphi 0, %s19
      %p16 = scmp.ge.s32.totalorder %s15, 4
      %s22 = sphi 0, %s34
      %s23 = sphi 0, %s30
      %s24 = sphi 0, %s22
      %s25 = sphi 0, %s23
      %s26 = sphi 0, %s24
      %s27 = sphi 0, %s25
      %s39 = sphi 0, %s41
      %s42 = sphi 0, %s39
      %s43 = sphi 0, %s42
      %s59 = sphi 0, %s43
      %s63 = sphi 0, %s63
      %s65 = sphi 0, %s63
      %s66 = sphi 0, %s65
      %s80 = sphi 0, %s66
      %s84 = sphi 0, %s84
      %s86 = sphi 0, %s84
      %s87 = sphi 0, %s86
      %s101 = sphi 0, %s87
      %s109 = sphi 0, %s111
      %s112 = sphi 0, %s109
      %s113 = sphi 0, %s112
      %s129 = sphi 0, %s113
    $region4: #{tpu_custom_call.1} parent=1 // loop_header_branch
      %18 = sbr.rel (%p16) target = $region8
    $region5: #{tpu_custom_call.1} parent=1 // loop_body
      %s20 = ssub.s32 %s15, 1
      %s21 = ssub.s32 %s15, 2
      %s28 = sadd.s32 1, %s23
      %p29 = scmp.ge.s32.totalorder %s28, 1
      %s30 = scalar_select %p29, 0, %s28
      %s31 = sadd.s32 1, %s22
      %s32 = scalar_select %p29, %s31, %s22
      %p33 = scmp.ge.s32.totalorder %s32, 2
      %s34 = scalar_select %p33, 0, %s32
      %s35 = ssub.s32 %s22, %s34
      %s36 = ssub.s32 %s23, %s30
      %s37 = sor.u32 %s35, %s36
      %p38 = scmp.eq.s32.totalorder %s37, 0
      %s40 = sadd.s32 %s39, 1
      %s41 = scalar_select %p38, %s39, %s40
      %p44 = pneg %p38
      %p45 = scmp.eq.s32.totalorder %s15, 1
      %p46 = por %p44, %p45
      %p47 = scmp.ne.s32.totalorder %s39, %s42
      %p48 = scmp.eq.s32.totalorder %s15, 0
      %p49 = por %p47, %p48
      %p50 = scmp.ne.s32.totalorder %s39, %s42
      %p51 = scmp.eq.s32.totalorder %s20, 1
      %p52 = por %p50, %p51
      %p53 = scmp.ne.s32.totalorder %s42, %s43
      %p54 = scmp.eq.s32.totalorder %s20, 0
      %p55 = por %p53, %p54
      %p56 = scmp.ne.s32.totalorder %s42, %s43
      %p57 = scmp.eq.s32.totalorder %s21, 1
      %p58 = por %p56, %p57
      %p60 = scmp.ne.s32.totalorder %s43, %s59
      %p61 = scmp.eq.s32.totalorder %s21, 0
      %p62 = por %p60, %p61
      %s64 = sadd.s32 %s63, 1
      %p67 = scmp.eq.s32.totalorder %s15, 1
      %p68 = scmp.ne.s32.totalorder %s63, %s65
      %p69 = scmp.eq.s32.totalorder %s15, 0
      %p70 = por %p68, %p69
      %p71 = scmp.ne.s32.totalorder %s63, %s65
      %p72 = scmp.eq.s32.totalorder %s20, 1
      %p73 = por %p71, %p72
      %p74 = scmp.ne.s32.totalorder %s65, %s66
      %p75 = scmp.eq.s32.totalorder %s20, 0
      %p76 = por %p74, %p75
      %p77 = scmp.ne.s32.totalorder %s65, %s66
      %p78 = scmp.eq.s32.totalorder %s21, 1
      %p79 = por %p77, %p78
      %p81 = scmp.ne.s32.totalorder %s66, %s80
      %p82 = scmp.eq.s32.totalorder %s21, 0
      %p83 = por %p81, %p82
      %s85 = sadd.s32 %s84, 1
      %p88 = scmp.eq.s32.totalorder %s15, 1
      %p89 = scmp.ne.s32.totalorder %s84, %s86
      %p90 = scmp.eq.s32.totalorder %s15, 0
      %p91 = por %p89, %p90
      %p92 = scmp.ne.s32.totalorder %s84, %s86
      %p93 = scmp.eq.s32.totalorder %s20, 1
      %p94 = por %p92, %p93
      %p95 = scmp.ne.s32.totalorder %s86, %s87
      %p96 = scmp.eq.s32.totalorder %s20, 0
      %p97 = por %p95, %p96
      %p98 = scmp.ne.s32.totalorder %s86, %s87
      %p99 = scmp.eq.s32.totalorder %s21, 1
      %p100 = por %p98, %p99
      %p102 = scmp.ne.s32.totalorder %s87, %s101
      %p103 = scmp.eq.s32.totalorder %s21, 0
      %p104 = por %p102, %p103
      %s105 = ssub.s32 %s22, %s34
      %s106 = ssub.s32 %s23, %s30
      %s107 = sor.u32 %s105, %s106
      %p108 = scmp.eq.s32.totalorder %s107, 0
      %s110 = sadd.s32 %s109, 1
      %s111 = scalar_select %p108, %s109, %s110
      %p114 = pneg %p108
      %p115 = scmp.eq.s32.totalorder %s15, 1
      %p116 = por %p114, %p115
      %p117 = scmp.ne.s32.totalorder %s109, %s112
      %p118 = scmp.eq.s32.totalorder %s15, 0
      %p119 = por %p117, %p118
      %p120 = scmp.ne.s32.totalorder %s109, %s112
      %p121 = scmp.eq.s32.totalorder %s20, 1
      %p122 = por %p120, %p121
      %p123 = scmp.ne.s32.totalorder %s112, %s113
      %p124 = scmp.eq.s32.totalorder %s20, 0
      %p125 = por %p123, %p124
      %p126 = scmp.ne.s32.totalorder %s112, %s113
      %p127 = scmp.eq.s32.totalorder %s21, 1
      %p128 = por %p126, %p127
      %p130 = scmp.ne.s32.totalorder %s113, %s129
      %p131 = scmp.eq.s32.totalorder %s21, 0
      %p132 = por %p130, %p131
      %p133 = scmp.le.s32.totalorder 1, %s15
      %p134 = scmp.lt.s32.totalorder %s15, 3
      %p135 = pnand %p133, %p134
      %p136 = pneg %p135
      // Predicated region
      $region9: #{tpu_custom_call.1} parent=5 // pred_check
        _
      $region10: #{tpu_custom_call.1} parent=5 // pred_check_branch
        %138 = sbr.rel (%p135) target = $region12
      $region11: #{tpu_custom_call.1} parent=5 // pred_region
        %s139 = ssub.s32 %s15, 1
        // Predicated region
        $region13: #{tpu_custom_call.1} parent=11 // pred_check
          %p140 = pneg %p76
        $region14: #{tpu_custom_call.1} parent=11 // pred_check_branch
          %142 = sbr.rel (%p140) target = $region16
        $region15: #{tpu_custom_call.1} parent=11 // pred_region
          _
        $region16: #{tpu_custom_call.1} parent=11 // pred_fallthru
          _
        // Predicated region
        $region17: #{tpu_custom_call.1} parent=11 // pred_check
          %p143 = pneg %p97
        $region18: #{tpu_custom_call.1} parent=11 // pred_check_branch
          %145 = sbr.rel (%p143) target = $region20
        $region19: #{tpu_custom_call.1} parent=11 // pred_region
          _
        $region20: #{tpu_custom_call.1} parent=11 // pred_fallthru
          _
      $region12: #{tpu_custom_call.1} parent=5 // pred_fallthru
        _
      %p146 = scmp.lt.s32.totalorder %s15, 2
      // Predicated region
      $region21: #{tpu_custom_call.1} parent=5 // pred_check
        %p147 = pneg %p146
      $region22: #{tpu_custom_call.1} parent=5 // pred_check_branch
        %149 = sbr.rel (%p147) target = $region24
      $region23: #{tpu_custom_call.1} parent=5 // pred_region
        // Predicated region
        $region25: #{tpu_custom_call.1} parent=23 // pred_check
          %p150 = pneg %p49
        $region26: #{tpu_custom_call.1} parent=23 // pred_check_branch
          %152 = sbr.rel (%p150) target = $region28
        $region27: #{tpu_custom_call.1} parent=23 // pred_region
          %s153 = sand.u32 %s39, 1
          %s154 = scalar_lea.sflag [#allocation3], %s153
          %s155 = sand.u32 %s39, 1
          %s156 = smul.addr %s155, 64
          %s157 = scalar_lea.vmem [#allocation2], %s156
          %s158 = smul.u32 4, %s23
          %s160 = ssub.s32 1024, 1024
          %161 = vsyncadd %s154, %s160
          %s162 = smul.addr %s158, 2
          %s163 = smul.addr %s22, 8
          %s164 = sadd.s32 %s162, %s163
          %s165 = smul.addr %s164, 128
          %s166 = scalar_lea.hbm %s0, %s165
          %s167 = sshll.u32 %s157, 4
          %s168 = int_to_ptr.vmem [resolvable:$true] %s167
          %173 = dma.hbm_to_vmem [thread:$0]  %s166, 1024, %s168, %s154, 128, 128, 8
        $region28: #{tpu_custom_call.1} parent=23 // pred_fallthru
          _
      $region24: #{tpu_custom_call.1} parent=5 // pred_fallthru
        _
      %p174 = scmp.le.s32.totalorder 1, %s15
      %p175 = scmp.lt.s32.totalorder %s15, 3
      %p176 = pnand %p174, %p175
      %p177 = pneg %p176
      // Predicated region
      $region29: #{tpu_custom_call.1} parent=5 // pred_check
        _
      $region30: #{tpu_custom_call.1} parent=5 // pred_check_branch
        %179 = sbr.rel (%p176) target = $region32
      $region31: #{tpu_custom_call.1} parent=5 // pred_region
        %s180 = ssub.s32 %s15, 1
        %s181 = sand.u32 %s42, 1
        %s182 = scalar_lea.sflag [#allocation3], %s181
        %s183 = sand.u32 %s42, 1
        %s184 = smul.addr %s183, 64
        %s185 = scalar_lea.vmem [#allocation2], %s184
        // Predicated region
        $region33: #{tpu_custom_call.1} parent=31 // pred_check
          %p186 = pneg %p55
        $region34: #{tpu_custom_call.1} parent=31 // pred_check_branch
          %188 = sbr.rel (%p186) target = $region36
        $region35: #{tpu_custom_call.1} parent=31 // pred_region
          %189 = dma.done %s182, 1024
        $region36: #{tpu_custom_call.1} parent=31 // pred_fallthru
          _
        %s190 = sand.u32 %s42, 1
        %s191 = scalar_lea.sflag [#allocation3], %s190
        %s192 = sand.u32 %s42, 1
        %s193 = smul.addr %s192, 64
        %s194 = scalar_lea.vmem [#allocation2], %s193
        %p195 = pneg %p55
        %p196 = pneg %p52
        %p197 = pneg %p76
        %p198 = pneg %p73
        %p199 = pneg %p97
        %p200 = pneg %p94
        %p201 = pneg %p125
        %p202 = pneg %p122
        %s203 = sand.u32 %s112, 1
        %s204 = scalar_lea.sflag [#allocation4], %s203
        %s205 = sand.u32 %s112, 1
        %s206 = smul.addr %s205, 16
        %s207 = scalar_lea.vmem [#allocation5], %s206
        %s208 = smul.u32 4, %s25
        %s209 = smul.u32 2, %s25
        %v210 = vld [vmem:[%s185] sm:$0xff]
        %v211 = vld [vmem:[%s185 + $0x8] sm:$0xff]
        %v212 = vld [vmem:[%s185 + $0x10] sm:$0xff]
        %v213 = vld [vmem:[%s185 + $0x18] sm:$0xff]
        %v214 = vld [vmem:[%s185 + $0x20] sm:$0xff]
        %v215 = vld [vmem:[%s185 + $0x28] sm:$0xff]
        %v216 = vld [vmem:[%s185 + $0x30] sm:$0xff]
        %v217 = vld [vmem:[%s185 + $0x38] sm:$0xff]
        %vm218 = vcmask 130048
        %v219 = vsel %vm218, %v210, 0.0
        %v220 = vsel %vm218, %v212, 0.0
        %v221 = vadd.f32 %v219, %v220
        %v222 = vsel %vm218, %v211, 0.0
        %v223 = vsel %vm218, %v213, 0.0
        %v224 = vadd.f32 %v222, %v223
        %v225 = vsel %vm218, %v214, 0.0
        %v226 = vsel %vm218, %v216, 0.0
        %v227 = vadd.f32 %v225, %v226
        %v228 = vsel %vm218, %v215, 0.0
        %v229 = vsel %vm218, %v217, 0.0
        %v230 = vadd.f32 %v228, %v229
        %v231 = vrcp.pop 2.0
        %v232 = vmul.f32 %v221, %v231
        %v233 = vmul.f32 %v224, %v231
        %v234 = vmul.f32 %v227, %v231
        %v235 = vmul.f32 %v230, %v231
        %v236 = vld [vmem:[%s2] sm:$0xff]
        %v237 = vld [vmem:[%s2 + $0x8] sm:$0xff]
        %v239 = vsel %vm218, %v232, 0
        %v242 = vsel %vm218, %v233, 0
        %v245 = vsel %vm218, %v234, 0
        %v248 = vsel %vm218, %v235, 0
        %250 = vmatprep.subr.mxu0 0.0
        %251 = vmatpush1.msra.mxu0 %v236
        %252 = vmatprep.subr.mxu0 0.0
        %253 = vmatpush1.msra.mxu0 %v237
        %254 = vmatprep.subr.mxu0 0.0
        %255 = vmatpush1.msra.mxu0 0.0
        %256 = vmatprep.subr.mxu0 0.0
        %257 = vmatpush1.msra.mxu0 0.0
        %258 = vmatprep.subr.mxu0 0.0
        %259 = vmatpush1.msra.mxu0 0.0
        %260 = vmatprep.subr.mxu0 0.0
        %261 = vmatpush1.msra.mxu0 0.0
        %262 = vmatprep.subr.mxu0 0.0
        %263 = vmatpush1.msra.mxu0 0.0
        %264 = vmatprep.subr.mxu0 0.0
        %265 = vmatpush1.msra.mxu0 0.0
        %266 = vmatprep.subr.mxu0 0.0
        %267 = vmatpush1.msra.mxu0 0.0
        %268 = vmatprep.subr.mxu0 0.0
        %269 = vmatpush1.msra.mxu0 0.0
        %270 = vmatprep.subr.mxu0 0.0
        %271 = vmatpush1.msra.mxu0 0.0
        %272 = vmatprep.subr.mxu0 0.0
        %273 = vmatpush1.msra.mxu0 0.0
        %274 = vmatprep.subr.mxu0 0.0
        %275 = vmatpush1.msra.mxu0 0.0
        %276 = vmatprep.subr.mxu0 0.0
        %277 = vmatpush1.msra.mxu0 0.0
        %278 = vmatprep.subr.mxu0 0.0
        %279 = vmatpush1.msra.mxu0 0.0
        %280 = vmatprep.subr.mxu0 0.0
        %281 = vmatpush1.msra.mxu0 0.0
        %282 = vmatprep.subr.mxu0 0.0
        %283 = vmatpush1.msra.mxu0 0.0
        %284 = vmatprep.subr.mxu0 0.0
        %285 = vmatpush1.msra.mxu0 0.0
        %286 = vmatprep.subr.mxu0 0.0
        %287 = vmatpush1.msra.mxu0 0.0
        %288 = vmatprep.subr.mxu0 0.0
        %289 = vmatpush1.msra.mxu0 0.0
        %290 = vmatprep.subr.mxu0 0.0
        %291 = vmatpush1.msra.mxu0 0.0
        %292 = vmatprep.subr.mxu0 0.0
        %293 = vmatpush1.msra.mxu0 0.0
        %294 = vmatprep.subr.mxu0 0.0
        %295 = vmatpush1.msra.mxu0 0.0
        %296 = vmatprep.subr.mxu0 0.0
        %297 = vmatpush1.msra.mxu0 0.0
        %298 = vmatprep.subr.mxu0 0.0
        %299 = vmatpush1.msra.mxu0 0.0
        %300 = vmatprep.subr.mxu0 0.0
        %301 = vmatpush1.msra.mxu0 0.0
        %302 = vmatprep.subr.mxu0 0.0
        %303 = vmatpush1.msra.mxu0 0.0
        %304 = vmatprep.subr.mxu0 0.0
        %305 = vmatpush1.msra.mxu0 0.0
        %306 = vmatprep.subr.mxu0 0.0
        %307 = vmatpush1.msra.mxu0 0.0
        %308 = vmatprep.subr.mxu0 0.0
        %309 = vmatpush1.msra.mxu0 0.0
        %310 = vmatprep.subr.mxu0 0.0
        %311 = vmatpush1.msra.mxu0 0.0
        %312 = vmatprep.subr.mxu0 0.0
        %313 = vmatpush1.msra.mxu0 0.0
        %314 = vmatprep.mubr.f32.mxu0 0.0
        %315 = vmatmul.mubr.f32.gmra.mrb[0].mxu0 %v239
        %v316 = vpop.f32.mrb[0].mxu0
        %v317 = vadd.f32 0.0, %v316
        %v318 = vpop.f32.mrb[0].mxu0
        %319 = vmatprep.mubr.f32.mxu0 0.0
        %320 = vmatmul.mubr.f32.gmra.mrb[0].mxu0 %v242
        %v321 = vpop.f32.mrb[0].mxu0
        %v322 = vadd.f32 0.0, %v321
        %v323 = vpop.f32.mrb[0].mxu0
        %324 = vmatprep.mubr.f32.mxu0 0.0
        %325 = vmatmul.mubr.f32.gmra.mrb[0].mxu0 %v245
        %v326 = vpop.f32.mrb[0].mxu0
        %v327 = vadd.f32 0.0, %v326
        %v328 = vpop.f32.mrb[0].mxu0
        %329 = vmatprep.mubr.f32.mxu0 0.0
        %330 = vmatmul.mubr.f32.gmra.mrb[0].mxu0 %v248
        %v331 = vpop.f32.mrb[0].mxu0
        %v332 = vadd.f32 0.0, %v331
        %v333 = vpop.f32.mrb[0].mxu0
        %334 = vdwg.mxu0
        %v335 = vld [vmem:[%s1] sm:$0xff]
        %v337 = vsel %vm218, %v335, 0
        %339 = vmatprep.subr.mxu0 0.0
        %340 = vmatpush1.msra.mxu0 %v317
        %341 = vmatprep.subr.mxu0 0.0
        %342 = vmatpush1.msra.mxu0 %v322
        %343 = vmatprep.subr.mxu0 0.0
        %344 = vmatpush1.msra.mxu0 0.0
        %345 = vmatprep.subr.mxu0 0.0
        %346 = vmatpush1.msra.mxu0 0.0
        %347 = vmatprep.subr.mxu0 0.0
        %348 = vmatpush1.msra.mxu0 0.0
        %349 = vmatprep.subr.mxu0 0.0
        %350 = vmatpush1.msra.mxu0 0.0
        %351 = vmatprep.subr.mxu0 0.0
        %352 = vmatpush1.msra.mxu0 0.0
        %353 = vmatprep.subr.mxu0 0.0
        %354 = vmatpush1.msra.mxu0 0.0
        %355 = vmatprep.subr.mxu0 0.0
        %356 = vmatpush1.msra.mxu0 0.0
        %357 = vmatprep.subr.mxu0 0.0
        %358 = vmatpush1.msra.mxu0 0.0
        %359 = vmatprep.subr.mxu0 0.0
        %360 = vmatpush1.msra.mxu0 0.0
        %361 = vmatprep.subr.mxu0 0.0
        %362 = vmatpush1.msra.mxu0 0.0
        %363 = vmatprep.subr.mxu0 0.0
        %364 = vmatpush1.msra.mxu0 0.0
        %365 = vmatprep.subr.mxu0 0.0
        %366 = vmatpush1.msra.mxu0 0.0
        %367 = vmatprep.subr.mxu0 0.0
        %368 = vmatpush1.msra.mxu0 0.0
        %369 = vmatprep.subr.mxu0 0.0
        %370 = vmatpush1.msra.mxu0 0.0
        %371 = vmatprep.subr.mxu0 0.0
        %372 = vmatpush1.msra.mxu0 0.0
        %373 = vmatprep.subr.mxu0 0.0
        %374 = vmatpush1.msra.mxu0 0.0
        %375 = vmatprep.subr.mxu0 0.0
        %376 = vmatpush1.msra.mxu0 0.0
        %377 = vmatprep.subr.mxu0 0.0
        %378 = vmatpush1.msra.mxu0 0.0
        %379 = vmatprep.subr.mxu0 0.0
        %380 = vmatpush1.msra.mxu0 0.0
        %381 = vmatprep.subr.mxu0 0.0
        %382 = vmatpush1.msra.mxu0 0.0
        %383 = vmatprep.subr.mxu0 0.0
        %384 = vmatpush1.msra.mxu0 0.0
        %385 = vmatprep.subr.mxu0 0.0
        %386 = vmatpush1.msra.mxu0 0.0
        %387 = vmatprep.subr.mxu0 0.0
        %388 = vmatpush1.msra.mxu0 0.0
        %389 = vmatprep.subr.mxu0 0.0
        %390 = vmatpush1.msra.mxu0 0.0
        %391 = vmatprep.subr.mxu0 0.0
        %392 = vmatpush1.msra.mxu0 0.0
        %393 = vmatprep.subr.mxu0 0.0
        %394 = vmatpush1.msra.mxu0 0.0
        %395 = vmatprep.subr.mxu0 0.0
        %396 = vmatpush1.msra.mxu0 0.0
        %397 = vmatprep.subr.mxu0 0.0
        %398 = vmatpush1.msra.mxu0 0.0
        %399 = vmatprep.subr.mxu0 0.0
        %400 = vmatpush1.msra.mxu0 0.0
        %401 = vmatprep.subr.mxu0 0.0
        %402 = vmatpush1.msra.mxu0 0.0
        %403 = vmatprep.mubr.f32.mxu0 0.0
        %404 = vmatmul.mubr.f32.gmra.mrb[0].mxu0 %v337
        %v405 = vpop.f32.mrb[0].mxu0
        %v406 = vadd.f32 0.0, %v405
        %v407 = vpop.f32.mrb[0].mxu0
        %408 = vdwg.mxu0
        %409 = vmatprep.subr.mxu0 0.0
        %410 = vmatpush1.msra.mxu0 %v327
        %411 = vmatprep.subr.mxu0 0.0
        %412 = vmatpush1.msra.mxu0 %v332
        %413 = vmatprep.subr.mxu0 0.0
        %414 = vmatpush1.msra.mxu0 0.0
        %415 = vmatprep.subr.mxu0 0.0
        %416 = vmatpush1.msra.mxu0 0.0
        %417 = vmatprep.subr.mxu0 0.0
        %418 = vmatpush1.msra.mxu0 0.0
        %419 = vmatprep.subr.mxu0 0.0
        %420 = vmatpush1.msra.mxu0 0.0
        %421 = vmatprep.subr.mxu0 0.0
        %422 = vmatpush1.msra.mxu0 0.0
        %423 = vmatprep.subr.mxu0 0.0
        %424 = vmatpush1.msra.mxu0 0.0
        %425 = vmatprep.subr.mxu0 0.0
        %426 = vmatpush1.msra.mxu0 0.0
        %427 = vmatprep.subr.mxu0 0.0
        %428 = vmatpush1.msra.mxu0 0.0
        %429 = vmatprep.subr.mxu0 0.0
        %430 = vmatpush1.msra.mxu0 0.0
        %431 = vmatprep.subr.mxu0 0.0
        %432 = vmatpush1.msra.mxu0 0.0
        %433 = vmatprep.subr.mxu0 0.0
        %434 = vmatpush1.msra.mxu0 0.0
        %435 = vmatprep.subr.mxu0 0.0
        %436 = vmatpush1.msra.mxu0 0.0
        %437 = vmatprep.subr.mxu0 0.0
        %438 = vmatpush1.msra.mxu0 0.0
        %439 = vmatprep.subr.mxu0 0.0
        %440 = vmatpush1.msra.mxu0 0.0
        %441 = vmatprep.subr.mxu0 0.0
        %442 = vmatpush1.msra.mxu0 0.0
        %443 = vmatprep.subr.mxu0 0.0
        %444 = vmatpush1.msra.mxu0 0.0
        %445 = vmatprep.subr.mxu0 0.0
        %446 = vmatpush1.msra.mxu0 0.0
        %447 = vmatprep.subr.mxu0 0.0
        %448 = vmatpush1.msra.mxu0 0.0
        %449 = vmatprep.subr.mxu0 0.0
        %450 = vmatpush1.msra.mxu0 0.0
        %451 = vmatprep.subr.mxu0 0.0
        %452 = vmatpush1.msra.mxu0 0.0
        %453 = vmatprep.subr.mxu0 0.0
        %454 = vmatpush1.msra.mxu0 0.0
        %455 = vmatprep.subr.mxu0 0.0
        %456 = vmatpush1.msra.mxu0 0.0
        %457 = vmatprep.subr.mxu0 0.0
        %458 = vmatpush1.msra.mxu0 0.0
        %459 = vmatprep.subr.mxu0 0.0
        %460 = vmatpush1.msra.mxu0 0.0
        %461 = vmatprep.subr.mxu0 0.0
        %462 = vmatpush1.msra.mxu0 0.0
        %463 = vmatprep.subr.mxu0 0.0
        %464 = vmatpush1.msra.mxu0 0.0
        %465 = vmatprep.subr.mxu0 0.0
        %466 = vmatpush1.msra.mxu0 0.0
        %467 = vmatprep.subr.mxu0 0.0
        %468 = vmatpush1.msra.mxu0 0.0
        %469 = vmatprep.subr.mxu0 0.0
        %470 = vmatpush1.msra.mxu0 0.0
        %471 = vmatprep.subr.mxu0 0.0
        %472 = vmatpush1.msra.mxu0 0.0
        %473 = vmatprep.mubr.f32.mxu0 0.0
        %474 = vmatmul.mubr.f32.gmra.mrb[0].mxu0 %v337
        %v475 = vpop.f32.mrb[0].mxu0
        %v476 = vadd.f32 0.0, %v475
        %v477 = vpop.f32.mrb[0].mxu0
        %478 = vdwg.mxu0
        %vm479 = vcmask 64512
        %480 = vst.msk [vmem:[%s207] sm:$0xff] %vm479, %v406
        %481 = vst.msk [vmem:[%s207 + $0x8] sm:$0xff] %vm479, %v476
        %s482 = sand.u32 %s112, 1
        %s483 = scalar_lea.sflag [#allocation4], %s482
        %s484 = sand.u32 %s112, 1
        %s485 = smul.addr %s484, 16
        %s486 = scalar_lea.vmem [#allocation5], %s485
        // Predicated region
        $region37: #{tpu_custom_call.1} parent=31 // pred_check
          %p487 = pneg %p122
        $region38: #{tpu_custom_call.1} parent=31 // pred_check_branch
          %489 = sbr.rel (%p487) target = $region40
        $region39: #{tpu_custom_call.1} parent=31 // pred_region
          %s490 = smul.u32 2, %s25
          %s492 = ssub.s32 256, 256
          %493 = vsyncadd %s483, %s492
          %s494 = smul.addr %s24, 2
          %s495 = sadd.s32 %s490, %s494
          %s496 = smul.addr %s495, 128
          %s497 = scalar_lea.hbm %s3, %s496
          %s498 = sshll.u32 %s486, 4
          %s499 = int_to_ptr.vmem [resolvable:$true] %s498
          %504 = dma.vmem_to_hbm [thread:$0]  %s499, 256, %s497, %s483, 128, 128, 8
        $region40: #{tpu_custom_call.1} parent=31 // pred_fallthru
          _
      $region32: #{tpu_custom_call.1} parent=5 // pred_fallthru
        _
      %p505 = scmp.le.s32.totalorder 2, %s15
      // Predicated region
      $region41: #{tpu_custom_call.1} parent=5 // pred_check
        %p506 = pneg %p505
      $region42: #{tpu_custom_call.1} parent=5 // pred_check_branch
        %508 = sbr.rel (%p506) target = $region44
      $region43: #{tpu_custom_call.1} parent=5 // pred_region
        %s509 = ssub.s32 %s15, 2
        // Predicated region
        $region45: #{tpu_custom_call.1} parent=43 // pred_check
          %p510 = pneg %p128
        $region46: #{tpu_custom_call.1} parent=43 // pred_check_branch
          %512 = sbr.rel (%p510) target = $region48
        $region47: #{tpu_custom_call.1} parent=43 // pred_region
          %s513 = sand.u32 %s113, 1
          %s514 = scalar_lea.sflag [#allocation4], %s513
          %s515 = sand.u32 %s113, 1
          %s516 = smul.addr %s515, 16
          %s517 = scalar_lea.vmem [#allocation5], %s516
          %518 = dma.done %s514, 256
        $region48: #{tpu_custom_call.1} parent=43 // pred_fallthru
          _
      $region44: #{tpu_custom_call.1} parent=5 // pred_fallthru
        _
    $region6: #{tpu_custom_call.1} parent=1 // loop_footer
      %s19 = sadd.s32 1, %s15
    $region7: #{tpu_custom_call.1} parent=1 // loop_footer_branch
      %14 = sbr.rel target = $region3
    $region8: #{tpu_custom_call.1} parent=1 // loop_exit
      _
    %519 = vsyncpa [#allocation3], 1
    %s520 = scalar_lea.sflag [#allocation3], 1
    %521 = vsyncpa %s520, 1
    %522 = vsyncpa [#allocation4], 1
    %s523 = scalar_lea.sflag [#allocation4], 1
    %524 = vsyncpa %s523, 1

</llo_original>
